<compile_context>
chip_gen: v6e
topology: v6e:2x2x1
jax: 0.10.0
libtpu: 0.0.40
codegen_flags: <defaults>
</compile_context>

<pallas_src>
import functools
import math

import jax
import jax.numpy as jnp
from jax.experimental import pallas as pl
from jax.experimental.pallas import tpu as pltpu


# ----------------------------------------------------------------------------- helpers ----

def _layer_norm(x, gamma, beta, eps=1e-5):
    # PyTorch LayerNorm: biased variance over the last dim; computed in f32.
    x = x.astype(jnp.float32)
    mu = jnp.mean(x, axis=-1, keepdims=True)
    var = jnp.mean(jnp.square(x - mu), axis=-1, keepdims=True)
    return (x - mu) * jax.lax.rsqrt(var + eps) * gamma + beta


def _tpu_generation():
    try:
        kind = jax.devices()[0].device_kind.lower()
    except Exception:
        return 6
    if "v7" in kind or "7x" in kind:
        return 7
    if "v6" in kind:
        return 6
    if "v5" in kind:
        return 5
    if "v4" in kind:
        return 4
    return 6


def _vmem_capacity_bytes():
    try:
        return int(pltpu.get_tpu_info().vmem_capacity_bytes)
    except Exception:
        return (64 << 20) if _tpu_generation() >= 7 else (128 << 20)


def _vmem_limit(est_bytes):
    """Derive a scoped-VMEM limit from the estimated per-kernel footprint (+ headroom)."""
    cap = _vmem_capacity_bytes()
    limit = int(est_bytes) * 2 + (16 << 20)        # 2x estimate + compiler-scratch headroom
    return max(32 << 20, min(limit, int(cap * 0.9)))


def _pick_tile(dim, cap, align=8, lane=False):
    """Largest `align`-aligned divisor of dim that is <= cap (or the full dim when small).

    Falls back to the full dimension when no aligned divisor exists (valid per the
    "block equals full array dim" exemption, at the cost of a larger tile).
    """
    if dim <= cap:
        return dim
    t = (cap // align) * align
    while t >= align:
        if dim % t == 0:
            return t
        t -= align
    if lane:
        return dim                     # lane dims must stay 128-aligned or full
    if align > 8:
        return _pick_tile(dim, cap, 8)
    return dim


# ----------------------------------------------------------------------------- kernels ----

def _qkv_proj_kernel(num_heads, x_ref, wqkv_ref, q_ref, k_ref, v_ref):
    """Fused QKV projection; writes head-major (H, TS, dk) Q/K/V. 1/sqrt(dk) is in Wq."""
    TS, D = x_ref.shape[1], x_ref.shape[2]
    H = num_heads
    dk = D // H
    qkv = jnp.dot(x_ref[0], wqkv_ref[...], preferred_element_type=jnp.float32)   # (TS, 3D)

    def to_heads(t):                    # (TS, D) -> (H, TS, dk): single relayout per tile
        return t.reshape(TS, H, dk).transpose(1, 0, 2)

    q_ref[0] = to_heads(qkv[:, :D]).astype(q_ref.dtype)
    k_ref[0] = to_heads(qkv[:, D:2 * D]).astype(k_ref.dtype)
    v_ref[0] = to_heads(qkv[:, 2 * D:]).astype(v_ref.dtype)


def _attention_kernel(exp_dtype, approx_recip,
                      q_ref, k_ref, v_ref, wo_ref, ln1g_ref, ln1b_ref,
                      y_ref, m_sc, l_sc, acc_sc):
    """Flash attention over kv tiles + Wo + residual + LN1 in the epilogue."""
    ki = pl.program_id(2)
    nk = pl.num_programs(2)
    H, TQ, dk = q_ref.shape[1], q_ref.shape[2], q_ref.shape[3]
    D = H * dk
    cdt = wo_ref.dtype

    @pl.when(ki == 0)
    def _init():
        m_sc[...] = jnp.full(m_sc.shape, -1e30, dtype=m_sc.dtype)
        l_sc[...] = jnp.zeros(l_sc.shape, l_sc.dtype)
        acc_sc[...] = jnp.zeros(acc_sc.shape, acc_sc.dtype)

    q = q_ref[0]                                                     # (H, TQ, dk)
    k = k_ref[0]                                                     # (H, TK, dk)
    v = v_ref[0]                                                     # (H, TK, dk)

    s = jnp.einsum('hqd,hkd->hqk', q, k,
                   preferred_element_type=jnp.float32)               # (H, TQ, TK) f32

    m_prev = m_sc[...]
    m_new = jnp.maximum(m_prev, jnp.max(s, axis=-1, keepdims=True))
    alpha = jnp.exp(m_prev - m_new)
    # exp in bf16 on v6e/v7x (bf16 EUP, and p is a bf16 matmul operand anyway); f32 on v5e.
    p = jnp.exp((s - m_new).astype(exp_dtype))
    l_sc[...] = alpha * l_sc[...] + jnp.sum(p, axis=-1, keepdims=True,
                                            dtype=jnp.float32)
    pv = p if p.dtype == cdt else p.astype(cdt)
    acc_sc[...] = alpha * acc_sc[...] + jnp.einsum(
        'hqk,hkd->hqd', pv, v, preferred_element_type=jnp.float32)
    m_sc[...] = m_new

    @pl.when(ki == nk - 1)
    def _finalize():
        if approx_recip:
            inv_l = pl.reciprocal(l_sc[...], approx=True)
        else:
            inv_l = 1.0 / l_sc[...]
        ctx = acc_sc[...] * inv_l                                    # (H, TQ, dk) f32
        ctx2 = ctx.transpose(1, 0, 2).reshape(TQ, D)                 # one relayout, lane-dense
        # MultiHeadAttention: layer_norm(output_linear(ctx) + ctx)
        y = jnp.dot(ctx2.astype(cdt), wo_ref[...],
                    preferred_element_type=jnp.float32) + ctx2
        y = _layer_norm(y, ln1g_ref[0], ln1b_ref[0])
        y_ref[0] = y.astype(y_ref.dtype)


def _ffn_kernel(cdt, y_ref, w1_ref, b1_ref, w2_ref, b2_ref, ln2g_ref, ln2b_ref,
                o_ref, acc_sc):
    """PositionwiseFeedForward tiled over d_ff: layer_norm(W2(gelu(W1 y + b1)) + b2 + y)."""
    j = pl.program_id(1)
    nj = pl.num_programs(1)

    @pl.when(j == 0)
    def _init():
        acc_sc[...] = jnp.zeros(acc_sc.shape, acc_sc.dtype)

    y = y_ref[...]                                                   # (TR, D) f32
    h1 = jnp.dot(y.astype(cdt), w1_ref[...],
                 preferred_element_type=jnp.float32) + b1_ref[0]
    h1 = jax.nn.gelu(h1, approximate=False)                          # exact erf GELU
    acc_sc[...] += jnp.dot(h1.astype(cdt), w2_ref[...],
                           preferred_element_type=jnp.float32)

    @pl.when(j == nj - 1)
    def _finalize():
        z = _layer_norm(acc_sc[...] + b2_ref[0] + y, ln2g_ref[0], ln2b_ref[0])
        o_ref[...] = z.astype(o_ref.dtype)


# ----------------------------------------------------------------------------- wrapper ----

def transformer_block(x, params, num_heads, *, compute_dtype=jnp.bfloat16,
                      q_tile=None, kv_tile=None, ff_tile=None, row_tile=None):
    B, S, D = x.shape
    assert D % num_heads == 0
    H = num_heads
    dk = D // H
    d_ff = params["w1"].shape[0]
    cdt = compute_dtype
    isz = 2 if cdt == jnp.bfloat16 else 4
    gen = _tpu_generation()

    # ---- host-side weight prep: pre-transposed, K/V/Q fused, scale folded into Wq ----
    scale = 1.0 / math.sqrt(dk)
    wqkv_t = jnp.concatenate([params["wq"].T * scale, params["wk"].T, params["wv"].T],
                             axis=1).astype(cdt)                     # (D, 3D)
    wo_t = params["wo"].T.astype(cdt)                                # (D, D)
    w1_t = params["w1"].T.astype(cdt)                                # (D, d_ff)
    w2_t = params["w2"].T.astype(cdt)                                # (d_ff, D)
    b1 = params["b1"].astype(jnp.float32)
    b2 = params["b2"].astype(jnp.float32)
    ln1g, ln1b = params["ln1_g"].astype(jnp.float32), params["ln1_b"].astype(jnp.float32)
    ln2g, ln2b = params["ln2_g"].astype(jnp.float32), params["ln2_b"].astype(jnp.float32)
    x_c = x.astype(cdt)

    # ---- generation-aware tiling (v7x has 64 MiB VMEM; v5e/v6e have 128 MiB) ----
    sub_align = 16 if cdt == jnp.bfloat16 else 8
    if q_tile is None:
        q_tile = 128 if gen >= 7 else 256
    if kv_tile is None:
        kv_tile = 256 if gen >= 7 else 512
    if ff_tile is None:
        ff_tile = 1024 if gen >= 7 else 2048
    if row_tile is None:
        row_tile = 256 if gen >= 7 else 512

    tq = _pick_tile(S, q_tile, sub_align)
    tk = _pick_tile(S, kv_tile, sub_align)
    ts = _pick_tile(S, kv_tile, sub_align)
    # keep both v7x TensorCores busy when B == 1 (need >= 2 parallel grid steps)
    if gen >= 7 and B == 1 and S // tq < 2 and tq > sub_align:
        tq2 = _pick_tile(S, max(sub_align, tq // 2), sub_align)
        if S // tq2 >= 2:
            tq = tq2
    tf = _pick_tile(d_ff, ff_tile, 128, lane=True)
    R = B * S
    tr = _pick_tile(R, row_tile, sub_align)

    nq, nk, ns = S // tq, S // tk, S // ts
    nf, nr = d_ff // tf, R // tr

    exp_dtype = jnp.bfloat16 if (cdt == jnp.bfloat16 and gen >= 6) else jnp.float32
    approx_recip = cdt == jnp.bfloat16

    # ================= Kernel 1: QKV projection (head-major output) =================
    qkv_est = (2 * ts * D * isz + 2 * 3 * D * D * isz + 6 * ts * D * isz
               + 2 * 3 * ts * D * 4)
    q_hm, k_hm, v_hm = pl.pallas_call(
        functools.partial(_qkv_proj_kernel, H),
        out_shape=(jax.ShapeDtypeStruct((B, H, S, dk), cdt),
                   jax.ShapeDtypeStruct((B, H, S, dk), cdt),
                   jax.ShapeDtypeStruct((B, H, S, dk), cdt)),
        grid_spec=pltpu.PrefetchScalarGridSpec(
            num_scalar_prefetch=0,
            grid=(B, ns),
            in_specs=[
                pl.BlockSpec((1, ts, D), lambda b, si: (b, si, 0)),
                pl.BlockSpec((D, 3 * D), lambda b, si: (0, 0)),
            ],
            out_specs=[
                pl.BlockSpec((1, H, ts, dk), lambda b, si: (b, 0, si, 0)),
                pl.BlockSpec((1, H, ts, dk), lambda b, si: (b, 0, si, 0)),
                pl.BlockSpec((1, H, ts, dk), lambda b, si: (b, 0, si, 0)),
            ],
        ),
        compiler_params=pltpu.CompilerParams(
            dimension_semantics=("parallel", "parallel"),
            vmem_limit_bytes=_vmem_limit(qkv_est)),
        cost_estimate=pl.CostEstimate(
            flops=int(6 * B * S * D * D),
            transcendentals=0,
            bytes_accessed=int(B * S * D * isz + 3 * D * D * isz + 3 * B * S * D * isz)),
    )(x_c, wqkv_t)

    # ================= Kernel 2: flash attention + Wo + residual + LN1 ==============
    attn_est = (2 * tq * D * isz + 4 * tk * D * isz + 2 * D * D * isz
                + 2 * tq * D * 4 + 4 * H * tq * 4 + tq * D * 4
                + 3 * H * tq * tk * 4 + 4 * tq * D * 4)
    y = pl.pallas_call(
        functools.partial(_attention_kernel, exp_dtype, approx_recip),
        out_shape=jax.ShapeDtypeStruct((B, S, D), jnp.float32),
        grid_spec=pltpu.PrefetchScalarGridSpec(
            num_scalar_prefetch=0,
            grid=(B, nq, nk),
            in_specs=[
                pl.BlockSpec((1, H, tq, dk), lambda b, qi, ki: (b, 0, qi, 0)),  # Q (resident over kv)
                pl.BlockSpec((1, H, tk, dk), lambda b, qi, ki: (b, 0, ki, 0)),  # K
                pl.BlockSpec((1, H, tk, dk), lambda b, qi, ki: (b, 0, ki, 0)),  # V
                pl.BlockSpec((D, D), lambda b, qi, ki: (0, 0)),                 # Wo^T
                pl.BlockSpec((1, D), lambda b, qi, ki: (0, 0)),                 # LN1 gamma
                pl.BlockSpec((1, D), lambda b, qi, ki: (0, 0)),                 # LN1 beta
            ],
            out_specs=pl.BlockSpec((1, tq, D), lambda b, qi, ki: (b, qi, 0)),
            scratch_shapes=[
                pltpu.VMEM((H, tq, 1), jnp.float32),    # running max m
                pltpu.VMEM((H, tq, 1), jnp.float32),    # running denom l
                pltpu.VMEM((H, tq, dk), jnp.float32),   # context accumulator
            ],
        ),
        compiler_params=pltpu.CompilerParams(
            dimension_semantics=("parallel", "parallel", "arbitrary"),
            vmem_limit_bytes=_vmem_limit(attn_est)),
        cost_estimate=pl.CostEstimate(
            flops=int(4 * B * S * S * D + 2 * B * S * D * D),
            transcendentals=int(B * H * S * S),
            bytes_accessed=int(B * S * D * isz * (1 + 2 * nq) + D * D * isz + B * S * D * 4)),
    )(q_hm, k_hm, v_hm, wo_t, ln1g, ln1b)

    # ================= Kernel 3: FFN (tiled over d_ff) + residual + LN2 =============
    ffn_est = (2 * tr * D * 4 + 2 * D * tf * isz + 2 * tf * D * isz + 2 * tf * 4
               + 2 * tr * D * 4 + tr * D * 4 + 2 * tr * tf * 4)
    y2 = y.reshape(R, D)
    out2 = pl.pallas_call(
        functools.partial(_ffn_kernel, cdt),
        out_shape=jax.ShapeDtypeStruct((R, D), x.dtype),
        grid_spec=pltpu.PrefetchScalarGridSpec(
            num_scalar_prefetch=0,
            grid=(nr, nf),
            in_specs=[
                pl.BlockSpec((tr, D), lambda i, j: (i, 0)),    # y (resident over d_ff chunks)
                pl.BlockSpec((D, tf), lambda i, j: (0, j)),    # W1^T chunk
                pl.BlockSpec((1, tf), lambda i, j: (0, j)),    # b1 chunk
                pl.BlockSpec((tf, D), lambda i, j: (j, 0)),    # W2^T chunk
                pl.BlockSpec((1, D), lambda i, j: (0, 0)),     # b2
                pl.BlockSpec((1, D), lambda i, j: (0, 0)),     # LN2 gamma
                pl.BlockSpec((1, D), lambda i, j: (0, 0)),     # LN2 beta
            ],
            out_specs=pl.BlockSpec((tr, D), lambda i, j: (i, 0)),
            scratch_shapes=[pltpu.VMEM((tr, D), jnp.float32)],
        ),
        compiler_params=pltpu.CompilerParams(
            dimension_semantics=("parallel", "arbitrary"),
            vmem_limit_bytes=_vmem_limit(ffn_est)),
        cost_estimate=pl.CostEstimate(
            flops=int(4 * R * D * d_ff),
            transcendentals=int(R * d_ff),
            bytes_accessed=int(R * D * 4 + 2 * D * d_ff * isz + R * D * x.dtype.itemsize)),
    )(y2, w1_t, b1, w2_t, b2, ln2g, ln2b)

    return out2.reshape(B, S, D)


# --------------------------------------------------------------------------- reference ----

def transformer_block_ref(x, params, num_heads):
    """Pure-JAX (f32) reference for verification."""
    B, S, D = x.shape
    d_k = D // num_heads
    q = x @ params["wq"].T
    k = x @ params["wk"].T
    v = x @ params["wv"].T

    def split(t):
        return t.reshape(B, S, num_heads, d_k).transpose(0, 2, 1, 3)

    q, k, v = split(q), split(k), split(v)
    scores = jnp.einsum("bhqd,bhkd->bhqk", q, k) / math.sqrt(d_k)
    p = jax.nn.softmax(scores, axis=-1)
    ctx = jnp.einsum("bhqk,bhkd->bhqd", p, v)
    attn_out = ctx.transpose(0, 2, 1, 3).reshape(B, S, D)
    y = _layer_norm(attn_out @ params["wo"].T + attn_out,
                    params["ln1_g"][0], params["ln1_b"][0])
    h1 = jax.nn.gelu(y @ params["w1"].T + params["b1"][0], approximate=False)
    ff = h1 @ params["w2"].T + params["b2"][0]
    return _layer_norm(ff + y, params["ln2_g"][0], params["ln2_b"][0])


def init_params(key, d_model, d_ff):
    ks = jax.random.split(key, 8)
    s_lin = 1.0 / math.sqrt(d_model)
    s_ff = 1.0 / math.sqrt(d_ff)
    return {
        "wq": jax.random.uniform(ks[0], (d_model, d_model), jnp.float32, -s_lin, s_lin),
        "wk": jax.random.uniform(ks[1], (d_model, d_model), jnp.float32, -s_lin, s_lin),
        "wv": jax.random.uniform(ks[2], (d_model, d_model), jnp.float32, -s_lin, s_lin),
        "wo": jax.random.uniform(ks[3], (d_model, d_model), jnp.float32, -s_lin, s_lin),
        "w1": jax.random.uniform(ks[4], (d_ff, d_model), jnp.float32, -s_lin, s_lin),
        "b1": jax.random.uniform(ks[6], (1, d_ff), jnp.float32, -s_lin, s_lin),
        "w2": jax.random.uniform(ks[5], (d_model, d_ff), jnp.float32, -s_ff, s_ff),
        "b2": jax.random.uniform(ks[7], (1, d_model), jnp.float32, -s_ff, s_ff),
        "ln1_g": jnp.ones((1, d_model), jnp.float32),
        "ln1_b": jnp.zeros((1, d_model), jnp.float32),
        "ln2_g": jnp.ones((1, d_model), jnp.float32),
        "ln2_b": jnp.zeros((1, d_model), jnp.float32),
    }


if __name__ == "__main__":
    B, S, d_model, num_heads, d_ff = 2, 8, 32, 4, 64
    key = jax.random.PRNGKey(0)
    k_x, k_p = jax.random.split(key)
    x = jax.random.normal(k_x, (B, S, d_model), jnp.float32)
    params = init_params(k_p, d_model, d_ff)

    ref = transformer_block_ref(x, params, num_heads)

    # Strict correctness check with f32 matmuls / f32 softmax.
    out_f32 = jax.block_until_ready(
        transformer_block(x, params, num_heads, compute_dtype=jnp.float32))
    assert out_f32.shape == (B, S, d_model)
    assert jnp.allclose(out_f32, ref, atol=2e-4, rtol=2e-4), "f32 kernel mismatch vs reference"

    # Default fast path: bf16 matmul operands (f32 accumulation) — loose sanity check.
    out_bf16 = jax.block_until_ready(transformer_block(x, params, num_heads))
    assert out_bf16.shape == (B, S, d_model)
    assert jnp.allclose(out_bf16, ref, atol=5e-2, rtol=5e-2), "bf16 kernel mismatch vs reference"

    print("KERNEL_OK")
</pallas_src>

<mosaic_0001>
module attributes {stable_mosaic.version = 11 : i64} {
  func.func @_qkv_proj_kernel(%arg0: i32, %arg1: i32, %arg2: memref<1x8x32xf32, #tpu.memory_space<vmem>>, %arg3: memref<32x96xf32, #tpu.memory_space<vmem>>, %arg4: memref<1x4x8x8xf32, #tpu.memory_space<vmem>>, %arg5: memref<1x4x8x8xf32, #tpu.memory_space<vmem>>, %arg6: memref<1x4x8x8xf32, #tpu.memory_space<vmem>>) attributes {dimension_semantics = [#tpu.dimension_semantics<parallel>, #tpu.dimension_semantics<parallel>], iteration_bounds = array<i64: 2, 1>, scalar_prefetch = 0 : i64, scratch_operands = 0 : i64, tpu.core_type = #tpu.core_type<tc>, window_params = [{transform_indices = @transform_0, window_bounds = array<i64: 1, 8, 32>}, {pipeline_mode = #tpu.pipeline_mode<synchronous>, transform_indices = @transform_1, window_bounds = array<i64: 32, 96>}, {transform_indices = @transform_2, window_bounds = array<i64: 1, 4, 8, 8>}, {transform_indices = @transform_3, window_bounds = array<i64: 1, 4, 8, 8>}, {transform_indices = @transform_4, window_bounds = array<i64: 1, 4, 8, 8>}]} {
    %c0 = arith.constant 0 : index
    %c0_0 = arith.constant 0 : index
    %c0_1 = arith.constant 0 : index
    %0 = vector.load %arg2[%c0, %c0_0, %c0_1] : memref<1x8x32xf32, #tpu.memory_space<vmem>>, vector<1x8x32xf32>
    %1 = vector.shape_cast %0 : vector<1x8x32xf32> to vector<8x32xf32>
    %c0_2 = arith.constant 0 : index
    %c0_3 = arith.constant 0 : index
    %2 = vector.load %arg3[%c0_2, %c0_3] : memref<32x96xf32, #tpu.memory_space<vmem>>, vector<32x96xf32>
    %cst = arith.constant dense<0.000000e+00> : vector<8x96xf32>
    %3 = tpu.matmul %1, %2, %cst {dimension_numbers = #tpu.dot_dimension_numbers<[1], [0], [0], [1], [0, 0, 1, 1], [], []>} : vector<8x32xf32>, vector<32x96xf32>, vector<8x96xf32> -> vector<8x96xf32>
    %4 = vector.extract_strided_slice %3 {offsets = [0, 0], sizes = [8, 32], strides = [1, 1]} : vector<8x96xf32> to vector<8x32xf32>
    %5 = vector.shape_cast %4 : vector<8x32xf32> to vector<8x4x8xf32>
    %6 = tpu.transpose %5, [1, 0, 2] : vector<8x4x8xf32> -> vector<4x8x8xf32>
    %c0_4 = arith.constant 0 : index
    %c0_5 = arith.constant 0 : index
    %c0_6 = arith.constant 0 : index
    %c0_7 = arith.constant 0 : index
    %7 = vector.load %arg4[%c0_4, %c0_5, %c0_6, %c0_7] : memref<1x4x8x8xf32, #tpu.memory_space<vmem>>, vector<1x4x8x8xf32>
    %8 = vector.shape_cast %7 : vector<1x4x8x8xf32> to vector<4x8x8xf32>
    %9 = vector.shape_cast %6 : vector<4x8x8xf32> to vector<1x4x8x8xf32>
    tpu.vector_store %arg4[%c0_4, %c0_5, %c0_6, %c0_7], %9 {strides = array<i32>} : memref<1x4x8x8xf32, #tpu.memory_space<vmem>>, vector<1x4x8x8xf32>,
    %10 = vector.extract_strided_slice %3 {offsets = [0, 32], sizes = [8, 32], strides = [1, 1]} : vector<8x96xf32> to vector<8x32xf32>
    %11 = vector.shape_cast %10 : vector<8x32xf32> to vector<8x4x8xf32>
    %12 = tpu.transpose %11, [1, 0, 2] : vector<8x4x8xf32> -> vector<4x8x8xf32>
    %c0_8 = arith.constant 0 : index
    %c0_9 = arith.constant 0 : index
    %c0_10 = arith.constant 0 : index
    %c0_11 = arith.constant 0 : index
    %13 = vector.load %arg5[%c0_8, %c0_9, %c0_10, %c0_11] : memref<1x4x8x8xf32, #tpu.memory_space<vmem>>, vector<1x4x8x8xf32>
    %14 = vector.shape_cast %13 : vector<1x4x8x8xf32> to vector<4x8x8xf32>
    %15 = vector.shape_cast %12 : vector<4x8x8xf32> to vector<1x4x8x8xf32>
    tpu.vector_store %arg5[%c0_8, %c0_9, %c0_10, %c0_11], %15 {strides = array<i32>} : memref<1x4x8x8xf32, #tpu.memory_space<vmem>>, vector<1x4x8x8xf32>,
    %16 = vector.extract_strided_slice %3 {offsets = [0, 64], sizes = [8, 32], strides = [1, 1]} : vector<8x96xf32> to vector<8x32xf32>
    %17 = vector.shape_cast %16 : vector<8x32xf32> to vector<8x4x8xf32>
    %18 = tpu.transpose %17, [1, 0, 2] : vector<8x4x8xf32> -> vector<4x8x8xf32>
    %c0_12 = arith.constant 0 : index
    %c0_13 = arith.constant 0 : index
    %c0_14 = arith.constant 0 : index
    %c0_15 = arith.constant 0 : index
    %19 = vector.load %arg6[%c0_12, %c0_13, %c0_14, %c0_15] : memref<1x4x8x8xf32, #tpu.memory_space<vmem>>, vector<1x4x8x8xf32>
    %20 = vector.shape_cast %19 : vector<1x4x8x8xf32> to vector<4x8x8xf32>
    %21 = vector.shape_cast %18 : vector<4x8x8xf32> to vector<1x4x8x8xf32>
    tpu.vector_store %arg6[%c0_12, %c0_13, %c0_14, %c0_15], %21 {strides = array<i32>} : memref<1x4x8x8xf32, #tpu.memory_space<vmem>>, vector<1x4x8x8xf32>,
    return
  }
  func.func @transform_0(%arg0: i32, %arg1: i32) -> (i32, i32, i32) {
    %c0_i32 = arith.constant 0 : i32
    %c0_i32_0 = arith.constant 0 : i32
    return %arg0, %arg1, %c0_i32 : i32, i32, i32
  }
  func.func @transform_1(%arg0: i32, %arg1: i32) -> (i32, i32) {
    %c0_i32 = arith.constant 0 : i32
    %c0_i32_0 = arith.constant 0 : i32
    %c0_i32_1 = arith.constant 0 : i32
    return %c0_i32, %c0_i32_0 : i32, i32
  }
  func.func @transform_2(%arg0: i32, %arg1: i32) -> (i32, i32, i32, i32) {
    %c0_i32 = arith.constant 0 : i32
    %c0_i32_0 = arith.constant 0 : i32
    %c0_i32_1 = arith.constant 0 : i32
    return %arg0, %c0_i32, %arg1, %c0_i32_0 : i32, i32, i32, i32
  }
  func.func @transform_3(%arg0: i32, %arg1: i32) -> (i32, i32, i32, i32) {
    %c0_i32 = arith.constant 0 : i32
    %c0_i32_0 = arith.constant 0 : i32
    %c0_i32_1 = arith.constant 0 : i32
    return %arg0, %c0_i32, %arg1, %c0_i32_0 : i32, i32, i32, i32
  }
  func.func @transform_4(%arg0: i32, %arg1: i32) -> (i32, i32, i32, i32) {
    %c0_i32 = arith.constant 0 : i32
    %c0_i32_0 = arith.constant 0 : i32
    %c0_i32_1 = arith.constant 0 : i32
    return %arg0, %c0_i32, %arg1, %c0_i32_0 : i32, i32, i32, i32
  }
}

</mosaic_0001>

<llo_original>
// kernel: tpu_custom_call.1
$region0: #{tpu_custom_call.1}
  #allocation0 [shape = 'u32[]', space=smem, size = 0x4, offset = 0x4, fixed_abs, tag = 'smem constant byte address 0x4 - core index']
  #allocation1 [shape = 'u32[144,128]{1,0:T(1,128)}', space=vmem, size = 0x12000, scoped, tag = 'internal scratch']
  %s0 = inlined_call_operand.hbm [shape: f32[2,8,32], index: 0, kind: input, shape index: {}]
  %s1 = inlined_call_operand.hbm [shape: f32[32,96], index: 1, kind: input, shape index: {}]
  %s2 = inlined_call_operand.hbm [shape: f32[2,4,8,8], index: 2, kind: output, shape index: {0}]
  %s3 = inlined_call_operand.hbm [shape: f32[2,4,8,8], index: 3, kind: output, shape index: {1}]
  %s4 = inlined_call_operand.hbm [shape: f32[2,4,8,8], index: 4, kind: output, shape index: {2}]
  %5 = xla_tuple %s2, %s3, %s4
  %s6 = sld [smem:[#allocation0]]
  $region65: #{tpu_custom_call.1} parent=0
    _
  %s8 = ssub.s32 1, %s6
  %s9 = scalar_select 0, %s8, %s6
  $region1: #{tpu_custom_call.1} parent=0
    #allocation2 [shape = 'u8[8192]{0}', space=vmem, size = 0x2000, scoped, tag = 'input window, operand 0']
    #allocation3 [shape = 's32[2]{0}', space=sflag, size = 0x8, scoped, tag = 'scoped memory for tpu_custom_call.1']
    #allocation4 [shape = 's32[2]{0}', space=sflag, size = 0x8, scoped, tag = 'scoped memory for tpu_custom_call.1']
    #allocation5 [shape = 'u8[16384]{0}', space=vmem, size = 0x4000, scoped, tag = 'input window, operand 1, single buffered']
    #allocation6 [shape = 's32[1]{0}', space=sflag, size = 0x4, scoped, tag = 'scoped memory for tpu_custom_call.1']
    #allocation7 [shape = 'u8[32768]{0}', space=vmem, size = 0x8000, scoped, tag = 'output window, operand 0']
    #allocation8 [shape = 'u8[32768]{0}', space=vmem, size = 0x8000, scoped, tag = 'output window, operand 1']
    #allocation9 [shape = 's32[2]{0}', space=sflag, size = 0x8, scoped, tag = 'scoped memory for tpu_custom_call.1']
    #allocation10 [shape = 'u8[32768]{0}', space=vmem, size = 0x8000, scoped, tag = 'output window, operand 2']
    %10 = vsyncpa [#allocation3], 0
    %s11 = scalar_lea.sflag [#allocation3], 1
    %12 = vsyncpa %s11, 0
    %13 = vsyncpa [#allocation6], 0
    %14 = vsyncpa [#allocation4], 0
    %s15 = scalar_lea.sflag [#allocation4], 1
    %16 = vsyncpa %s15, 0
    %17 = vsyncpa [#allocation9], 0
    %s18 = scalar_lea.sflag [#allocation9], 1
    %19 = vsyncpa %s18, 0
    loop: start=0, step=1, limit=4
    $region2: #{tpu_custom_call.1} parent=1 // loop_pre_header
      _
    $region3: #{tpu_custom_call.1} parent=1 // loop_header
      %s21 = sphi 0, %s25
      %p22 = scmp.ge.s32.totalorder %s21, 4
      %s28 = sphi 0, %s40
      %s29 = sphi 0, %s36
      %s30 = sphi 0, %s28
      %s31 = sphi 0, %s29
      %s32 = sphi 0, %s30
      %s33 = sphi 0, %s31
      %s45 = sphi 0, %s47
      %s48 = sphi 0, %s45
      %s49 = sphi 0, %s48
      %s65 = sphi 0, %s49
      %s69 = sphi 0, %s69
      %s71 = sphi 0, %s69
      %s72 = sphi 0, %s71
      %s86 = sphi 0, %s72
      %s94 = sphi 0, %s96
      %s97 = sphi 0, %s94
      %s98 = sphi 0, %s97
      %s114 = sphi 0, %s98
      %s122 = sphi 0, %s124
      %s125 = sphi 0, %s122
      %s126 = sphi 0, %s125
      %s142 = sphi 0, %s126
      %s150 = sphi 0, %s152
      %s153 = sphi 0, %s150
      %s154 = sphi 0, %s153
      %s170 = sphi 0, %s154
    $region4: #{tpu_custom_call.1} parent=1 // loop_header_branch
      %24 = sbr.rel (%p22) target = $region8
    $region5: #{tpu_custom_call.1} parent=1 // loop_body
      %s26 = ssub.s32 %s21, 1
      %s27 = ssub.s32 %s21, 2
      %s34 = sadd.s32 1, %s29
      %p35 = scmp.ge.s32.totalorder %s34, 1
      %s36 = scalar_select %p35, 0, %s34
      %s37 = sadd.s32 1, %s28
      %s38 = scalar_select %p35, %s37, %s28
      %p39 = scmp.ge.s32.totalorder %s38, 2
      %s40 = scalar_select %p39, 0, %s38
      %s41 = ssub.s32 %s28, %s40
      %s42 = ssub.s32 %s29, %s36
      %s43 = sor.u32 %s41, %s42
      %p44 = scmp.eq.s32.totalorder %s43, 0
      %s46 = sadd.s32 %s45, 1
      %s47 = scalar_select %p44, %s45, %s46
      %p50 = pneg %p44
      %p51 = scmp.eq.s32.totalorder %s21, 1
      %p52 = por %p50, %p51
      %p53 = scmp.ne.s32.totalorder %s45, %s48
      %p54 = scmp.eq.s32.totalorder %s21, 0
      %p55 = por %p53, %p54
      %p56 = scmp.ne.s32.totalorder %s45, %s48
      %p57 = scmp.eq.s32.totalorder %s26, 1
      %p58 = por %p56, %p57
      %p59 = scmp.ne.s32.totalorder %s48, %s49
      %p60 = scmp.eq.s32.totalorder %s26, 0
      %p61 = por %p59, %p60
      %p62 = scmp.ne.s32.totalorder %s48, %s49
      %p63 = scmp.eq.s32.totalorder %s27, 1
      %p64 = por %p62, %p63
      %p66 = scmp.ne.s32.totalorder %s49, %s65
      %p67 = scmp.eq.s32.totalorder %s27, 0
      %p68 = por %p66, %p67
      %s70 = sadd.s32 %s69, 1
      %p73 = scmp.eq.s32.totalorder %s21, 1
      %p74 = scmp.ne.s32.totalorder %s69, %s71
      %p75 = scmp.eq.s32.totalorder %s21, 0
      %p76 = por %p74, %p75
      %p77 = scmp.ne.s32.totalorder %s69, %s71
      %p78 = scmp.eq.s32.totalorder %s26, 1
      %p79 = por %p77, %p78
      %p80 = scmp.ne.s32.totalorder %s71, %s72
      %p81 = scmp.eq.s32.totalorder %s26, 0
      %p82 = por %p80, %p81
      %p83 = scmp.ne.s32.totalorder %s71, %s72
      %p84 = scmp.eq.s32.totalorder %s27, 1
      %p85 = por %p83, %p84
      %p87 = scmp.ne.s32.totalorder %s72, %s86
      %p88 = scmp.eq.s32.totalorder %s27, 0
      %p89 = por %p87, %p88
      %s90 = ssub.s32 %s28, %s40
      %s91 = ssub.s32 %s29, %s36
      %s92 = sor.u32 %s90, %s91
      %p93 = scmp.eq.s32.totalorder %s92, 0
      %s95 = sadd.s32 %s94, 1
      %s96 = scalar_select %p93, %s94, %s95
      %p99 = pneg %p93
      %p100 = scmp.eq.s32.totalorder %s21, 1
      %p101 = por %p99, %p100
      %p102 = scmp.ne.s32.totalorder %s94, %s97
      %p103 = scmp.eq.s32.totalorder %s21, 0
      %p104 = por %p102, %p103
      %p105 = scmp.ne.s32.totalorder %s94, %s97
      %p106 = scmp.eq.s32.totalorder %s26, 1
      %p107 = por %p105, %p106
      %p108 = scmp.ne.s32.totalorder %s97, %s98
      %p109 = scmp.eq.s32.totalorder %s26, 0
      %p110 = por %p108, %p109
      %p111 = scmp.ne.s32.totalorder %s97, %s98
      %p112 = scmp.eq.s32.totalorder %s27, 1
      %p113 = por %p111, %p112
      %p115 = scmp.ne.s32.totalorder %s98, %s114
      %p116 = scmp.eq.s32.totalorder %s27, 0
      %p117 = por %p115, %p116
      %s118 = ssub.s32 %s28, %s40
      %s119 = ssub.s32 %s29, %s36
      %s120 = sor.u32 %s118, %s119
      %p121 = scmp.eq.s32.totalorder %s120, 0
      %s123 = sadd.s32 %s122, 1
      %s124 = scalar_select %p121, %s122, %s123
      %p127 = pneg %p121
      %p128 = scmp.eq.s32.totalorder %s21, 1
      %p129 = por %p127, %p128
      %p130 = scmp.ne.s32.totalorder %s122, %s125
      %p131 = scmp.eq.s32.totalorder %s21, 0
      %p132 = por %p130, %p131
      %p133 = scmp.ne.s32.totalorder %s122, %s125
      %p134 = scmp.eq.s32.totalorder %s26, 1
      %p135 = por %p133, %p134
      %p136 = scmp.ne.s32.totalorder %s125, %s126
      %p137 = scmp.eq.s32.totalorder %s26, 0
      %p138 = por %p136, %p137
      %p139 = scmp.ne.s32.totalorder %s125, %s126
      %p140 = scmp.eq.s32.totalorder %s27, 1
      %p141 = por %p139, %p140
      %p143 = scmp.ne.s32.totalorder %s126, %s142
      %p144 = scmp.eq.s32.totalorder %s27, 0
      %p145 = por %p143, %p144
      %s146 = ssub.s32 %s28, %s40
      %s147 = ssub.s32 %s29, %s36
      %s148 = sor.u32 %s146, %s147
      %p149 = scmp.eq.s32.totalorder %s148, 0
      %s151 = sadd.s32 %s150, 1
      %s152 = scalar_select %p149, %s150, %s151
      %p155 = pneg %p149
      %p156 = scmp.eq.s32.totalorder %s21, 1
      %p157 = por %p155, %p156
      %p158 = scmp.ne.s32.totalorder %s150, %s153
      %p159 = scmp.eq.s32.totalorder %s21, 0
      %p160 = por %p158, %p159
      %p161 = scmp.ne.s32.totalorder %s150, %s153
      %p162 = scmp.eq.s32.totalorder %s26, 1
      %p163 = por %p161, %p162
      %p164 = scmp.ne.s32.totalorder %s153, %s154
      %p165 = scmp.eq.s32.totalorder %s26, 0
      %p166 = por %p164, %p165
      %p167 = scmp.ne.s32.totalorder %s153, %s154
      %p168 = scmp.eq.s32.totalorder %s27, 1
      %p169 = por %p167, %p168
      %p171 = scmp.ne.s32.totalorder %s154, %s170
      %p172 = scmp.eq.s32.totalorder %s27, 0
      %p173 = por %p171, %p172
      %p174 = scmp.le.s32.totalorder 1, %s21
      %p175 = scmp.lt.s32.totalorder %s21, 3
      %p176 = pnand %p174, %p175
      %p177 = pneg %p176
      // Predicated region
      $region9: #{tpu_custom_call.1} parent=5 // pred_check
        _
      $region10: #{tpu_custom_call.1} parent=5 // pred_check_branch
        %179 = sbr.rel (%p176) target = $region12
      $region11: #{tpu_custom_call.1} parent=5 // pred_region
        %s180 = ssub.s32 %s21, 1
        // Predicated region
        $region13: #{tpu_custom_call.1} parent=11 // pred_check
          %p181 = pneg %p82
        $region14: #{tpu_custom_call.1} parent=11 // pred_check_branch
          %183 = sbr.rel (%p181) target = $region16
        $region15: #{tpu_custom_call.1} parent=11 // pred_region
          %s185 = ssub.s32 512, 512
          %186 = vsyncadd [#allocation6], %s185
          %s187 = sshll.u32 [#allocation5], 4
          %s188 = int_to_ptr.vmem [resolvable:$true] %s187
          %193 = dma.hbm_to_vmem [thread:$0]  %s1, 512, %s188, [#allocation6], 128, 128, 8
        $region16: #{tpu_custom_call.1} parent=11 // pred_fallthru
          _
      $region12: #{tpu_custom_call.1} parent=5 // pred_fallthru
        _
      %p194 = scmp.lt.s32.totalorder %s21, 2
      // Predicated region
      $region17: #{tpu_custom_call.1} parent=5 // pred_check
        %p195 = pneg %p194
      $region18: #{tpu_custom_call.1} parent=5 // pred_check_branch
        %197 = sbr.rel (%p195) target = $region20
      $region19: #{tpu_custom_call.1} parent=5 // pred_region
        // Predicated region
        $region21: #{tpu_custom_call.1} parent=19 // pred_check
          %p198 = pneg %p55
        $region22: #{tpu_custom_call.1} parent=19 // pred_check_branch
          %200 = sbr.rel (%p198) target = $region24
        $region23: #{tpu_custom_call.1} parent=19 // pred_region
          %s201 = sand.u32 %s45, 1
          %s202 = scalar_lea.sflag [#allocation3], %s201
          %s203 = sand.u32 %s45, 1
          %s204 = smul.addr %s203, 8
          %s205 = scalar_lea.vmem [#allocation2], %s204
          %s207 = ssub.s32 128, 128
          %208 = vsyncadd %s202, %s207
          %s209 = sadd.s32 %s29, %s28
          %s210 = smul.addr %s209, 128
          %s211 = scalar_lea.hbm %s0, %s210
          %s213 = sshll.u32 %s205, 4
          %s214 = int_to_ptr.vmem [resolvable:$true] %s213
          %216 = dma.hbm_to_vmem [thread:$0]  %s211, 128, %s214, %s202
        $region24: #{tpu_custom_call.1} parent=19 // pred_fallthru
          _
      $region20: #{tpu_custom_call.1} parent=5 // pred_fallthru
        _
      %p217 = scmp.le.s32.totalorder 1, %s21
      %p218 = scmp.lt.s32.totalorder %s21, 3
      %p219 = pnand %p217, %p218
      %p220 = pneg %p219
      // Predicated region
      $region25: #{tpu_custom_call.1} parent=5 // pred_check
        _
      $region26: #{tpu_custom_call.1} parent=5 // pred_check_branch
        %222 = sbr.rel (%p219) target = $region28
      $region27: #{tpu_custom_call.1} parent=5 // pred_region
        %s223 = ssub.s32 %s21, 1
        %s224 = sand.u32 %s48, 1
        %s225 = scalar_lea.sflag [#allocation3], %s224
        %s226 = sand.u32 %s48, 1
        %s227 = smul.addr %s226, 8
        %s228 = scalar_lea.vmem [#allocation2], %s227
        // Predicated region
        $region29: #{tpu_custom_call.1} parent=27 // pred_check
          %p229 = pneg %p61
        $region30: #{tpu_custom_call.1} parent=27 // pred_check_branch
          %231 = sbr.rel (%p229) target = $region32
        $region31: #{tpu_custom_call.1} parent=27 // pred_region
          %232 = dma.done %s225, 128
        $region32: #{tpu_custom_call.1} parent=27 // pred_fallthru
          _
        // Predicated region
        $region33: #{tpu_custom_call.1} parent=27 // pred_check
          %p233 = pneg %p82
        $region34: #{tpu_custom_call.1} parent=27 // pred_check_branch
          %235 = sbr.rel (%p233) target = $region36
        $region35: #{tpu_custom_call.1} parent=27 // pred_region
          %236 = dma.done [#allocation6], 512
        $region36: #{tpu_custom_call.1} parent=27 // pred_fallthru
          _
        %s237 = sand.u32 %s48, 1
        %s238 = scalar_lea.sflag [#allocation3], %s237
        %s239 = sand.u32 %s48, 1
        %s240 = smul.addr %s239, 8
        %s241 = scalar_lea.vmem [#allocation2], %s240
        %p242 = pneg %p61
        %p243 = pneg %p58
        %p244 = pneg %p82
        %p245 = pneg %p79
        %p246 = pneg %p110
        %p247 = pneg %p107
        %s248 = sand.u32 %s97, 1
        %s249 = scalar_lea.sflag [#allocation4], %s248
        %s250 = sand.u32 %s97, 1
        %s251 = smul.addr %s250, 32
        %s252 = scalar_lea.vmem [#allocation7], %s251
        %p253 = pneg %p138
        %p254 = pneg %p135
        %s255 = sand.u32 %s26, 1
        %s256 = scalar_lea.sflag [#allocation9], %s255
        %s257 = sand.u32 %s125, 1
        %s258 = smul.addr %s257, 32
        %s259 = scalar_lea.vmem [#allocation8], %s258
        %p260 = pneg %p166
        %p261 = pneg %p163
        %s262 = sand.u32 %s26, 1
        %s263 = scalar_lea.sflag [#allocation9], %s262
        %s264 = sand.u32 %s153, 1
        %s265 = smul.addr %s264, 32
        %s266 = scalar_lea.vmem [#allocation10], %s265
        %v267 = vld [vmem:[%s228] sm:$0xff]
        %v268 = vld [vmem:[#allocation5] sm:$0xff]
        %v269 = vld [vmem:[#allocation5 + $0x8] sm:$0xff]
        %v270 = vld [vmem:[#allocation5 + $0x10] sm:$0xff]
        %v271 = vld [vmem:[#allocation5 + $0x18] sm:$0xff]
        %vm272 = vcmask 261120
        %v274 = vsel %vm272, %v267, 0
        %276 = vmatprep.subr.mxu0 0.0
        %277 = vmatpush1.msra.mxu0 0.0
        %278 = vmatprep.subr.mxu0 0.0
        %279 = vmatpush1.msra.mxu0 0.0
        %280 = vmatprep.subr.mxu0 0.0
        %281 = vmatpush1.msra.mxu0 0.0
        %282 = vmatprep.subr.mxu0 0.0
        %283 = vmatpush1.msra.mxu0 0.0
        %284 = vmatprep.subr.mxu0 0.0
        %285 = vmatpush1.msra.mxu0 0.0
        %286 = vmatprep.subr.mxu0 0.0
        %287 = vmatpush1.msra.mxu0 0.0
        %288 = vmatprep.subr.mxu0 0.0
        %289 = vmatpush1.msra.mxu0 0.0
        %290 = vmatprep.subr.mxu0 0.0
        %291 = vmatpush1.msra.mxu0 0.0
        %292 = vmatprep.subr.mxu0 0.0
        %293 = vmatpush1.msra.mxu0 0.0
        %294 = vmatprep.subr.mxu0 0.0
        %295 = vmatpush1.msra.mxu0 0.0
        %296 = vmatprep.subr.mxu0 0.0
        %297 = vmatpush1.msra.mxu0 0.0
        %298 = vmatprep.subr.mxu0 0.0
        %299 = vmatpush1.msra.mxu0 0.0
        %300 = vmatprep.subr.mxu0 0.0
        %301 = vmatpush1.msra.mxu0 %v271
        %302 = vmatprep.subr.mxu0 0.0
        %303 = vmatpush1.msra.mxu0 %v270
        %304 = vmatprep.subr.mxu0 0.0
        %305 = vmatpush1.msra.mxu0 %v269
        %306 = vmatprep.subr.mxu0 0.0
        %307 = vmatpush1.msra.mxu0 %v268
        %308 = vmatprep.subr.mxu0 0.0
        %309 = vmatpush2.msra.mxu0 0.0
        %310 = vmatprep.subr.mxu0 0.0
        %311 = vmatpush2.msra.mxu0 0.0
        %312 = vmatprep.subr.mxu0 0.0
        %313 = vmatpush2.msra.mxu0 0.0
        %314 = vmatprep.subr.mxu0 0.0
        %315 = vmatpush2.msra.mxu0 0.0
        %316 = vmatprep.subr.mxu0 0.0
        %317 = vmatpush2.msra.mxu0 0.0
        %318 = vmatprep.subr.mxu0 0.0
        %319 = vmatpush2.msra.mxu0 0.0
        %320 = vmatprep.subr.mxu0 0.0
        %321 = vmatpush2.msra.mxu0 0.0
        %322 = vmatprep.subr.mxu0 0.0
        %323 = vmatpush2.msra.mxu0 0.0
        %324 = vmatprep.subr.mxu0 0.0
        %325 = vmatpush2.msra.mxu0 0.0
        %326 = vmatprep.subr.mxu0 0.0
        %327 = vmatpush2.msra.mxu0 0.0
        %328 = vmatprep.subr.mxu0 0.0
        %329 = vmatpush2.msra.mxu0 0.0
        %330 = vmatprep.subr.mxu0 0.0
        %331 = vmatpush2.msra.mxu0 0.0
        %332 = vmatprep.subr.mxu0 0.0
        %333 = vmatpush2.msra.mxu0 0.0
        %334 = vmatprep.subr.mxu0 0.0
        %335 = vmatpush2.msra.mxu0 0.0
        %336 = vmatprep.subr.mxu0 0.0
        %337 = vmatpush2.msra.mxu0 0.0
        %338 = vmatprep.subr.mxu0 0.0
        %339 = vmatpush2.msra.mxu0 0.0
        %340 = vmatprep.mubr.f32.mxu0 0.0
        %341 = vmatmul.mubr.f32.gmra.mxu0 %v274
        %v342 = vpop.f32.mrf.mxu0
        %v343 = vadd.f32 0.0, %v342
        %v344 = vpop.f32.mrf.mxu0
        %345 = vdwg.mxu0
        %347 = vrot.lane.b32.xlu0 %v343, 120
        %v348 = vpop.permute.xlu0 %347
        %350 = vrot.lane.b32.xlu0 %v343, 112
        %v351 = vpop.permute.xlu0 %350
        %353 = vrot.lane.b32.xlu0 %v343, 104
        %v354 = vpop.permute.xlu0 %353
        %v356 = vcombine.low %v343, %v351
        %v357 = vcombine.high %v343, %v351
        %v359 = vunpack.c.l.s4 1983009808
        %v360 = vunpack.c.0.s8 %v359
        %v361 = vlaneseq
        %v362 = vshrl.u32 %v361, 7
        %v363 = vsub.s32 %v360, %v362
        %v364 = vrot.slane %v356, %v363
        %v366 = vunpack.c.l.s4 1983009808
        %v367 = vunpack.c.0.s8 %v366
        %v368 = vlaneseq
        %v369 = vshrl.u32 %v368, 7
        %v370 = vsub.s32 %v367, %v369
        %v371 = vrot.slane %v357, %v370
        %v372 = vcombine.low %v348, %v354
        %v373 = vcombine.high %v348, %v354
        %v375 = vunpack.c.l.s4 1983009808
        %v376 = vunpack.c.0.s8 %v375
        %v377 = vlaneseq
        %v378 = vshrl.u32 %v377, 7
        %v379 = vsub.s32 %v376, %v378
        %v380 = vrot.slane %v372, %v379
        %v382 = vunpack.c.l.s4 1983009808
        %v383 = vunpack.c.0.s8 %v382
        %v384 = vlaneseq
        %v385 = vshrl.u32 %v384, 7
        %v386 = vsub.s32 %v383, %v385
        %v387 = vrot.slane %v373, %v386
        %v388 = vcombine.low %v364, %v380
        %v389 = vcombine.high %v364, %v380
        %v391 = vunpack.c.l.s4 1934713408
        %v392 = vunpack.c.0.s8 %v391
        %v393 = vlaneseq
        %v394 = vshrl.u32 %v393, 7
        %v395 = vsub.s32 %v392, %v394
        %v396 = vrot.slane %v388, %v395
        %v398 = vunpack.c.l.s4 1934713408
        %v399 = vunpack.c.0.s8 %v398
        %v400 = vlaneseq
        %v401 = vshrl.u32 %v400, 7
        %v402 = vsub.s32 %v399, %v401
        %v403 = vrot.slane %v389, %v402
        %v404 = vcombine.low %v371, %v387
        %v405 = vcombine.high %v371, %v387
        %v407 = vunpack.c.l.s4 1934713408
        %v408 = vunpack.c.0.s8 %v407
        %v409 = vlaneseq
        %v410 = vshrl.u32 %v409, 7
        %v411 = vsub.s32 %v408, %v410
        %v412 = vrot.slane %v404, %v411
        %v414 = vunpack.c.l.s4 1934713408
        %v415 = vunpack.c.0.s8 %v414
        %v416 = vlaneseq
        %v417 = vshrl.u32 %v416, 7
        %v418 = vsub.s32 %v415, %v417
        %v419 = vrot.slane %v405, %v418
        %v420 = vcombine.high %v396, 0.0
        %v421 = vcombine.high %v403, 0.0
        %v422 = vcombine.high %v412, 0.0
        %v423 = vcombine.high %v419, 0.0
        %v424 = vcombine.low %v396, %v403
        %v426 = vunpack.c.l.s4 1983009808
        %v427 = vunpack.c.0.s8 %v426
        %v428 = vlaneseq
        %v429 = vshrl.u32 %v428, 7
        %v430 = vsub.s32 %v427, %v429
        %v431 = vrot.slane %v424, %v430
        %v432 = vcombine.low %v420, %v421
        %v434 = vunpack.c.l.s4 1983009808
        %v435 = vunpack.c.0.s8 %v434
        %v436 = vlaneseq
        %v437 = vshrl.u32 %v436, 7
        %v438 = vsub.s32 %v435, %v437
        %v439 = vrot.slane %v432, %v438
        %v440 = vcombine.low %v412, %v419
        %v442 = vunpack.c.l.s4 1983009808
        %v443 = vunpack.c.0.s8 %v442
        %v444 = vlaneseq
        %v445 = vshrl.u32 %v444, 7
        %v446 = vsub.s32 %v443, %v445
        %v447 = vrot.slane %v440, %v446
        %v448 = vcombine.low %v422, %v423
        %v450 = vunpack.c.l.s4 1983009808
        %v451 = vunpack.c.0.s8 %v450
        %v452 = vlaneseq
        %v453 = vshrl.u32 %v452, 7
        %v454 = vsub.s32 %v451, %v453
        %v455 = vrot.slane %v448, %v454
        %v456 = vcombine.low %v431, %v439
        %v457 = vcombine.high %v431, %v439
        %v459 = vunpack.c.l.s4 1934713408
        %v460 = vunpack.c.0.s8 %v459
        %v461 = vlaneseq
        %v462 = vshrl.u32 %v461, 7
        %v463 = vsub.s32 %v460, %v462
        %v464 = vrot.slane %v456, %v463
        %v466 = vunpack.c.l.s4 1934713408
        %v467 = vunpack.c.0.s8 %v466
        %v468 = vlaneseq
        %v469 = vshrl.u32 %v468, 7
        %v470 = vsub.s32 %v467, %v469
        %v471 = vrot.slane %v457, %v470
        %v472 = vcombine.low %v447, %v455
        %v473 = vcombine.high %v447, %v455
        %v475 = vunpack.c.l.s4 1934713408
        %v476 = vunpack.c.0.s8 %v475
        %v477 = vlaneseq
        %v478 = vshrl.u32 %v477, 7
        %v479 = vsub.s32 %v476, %v478
        %v480 = vrot.slane %v472, %v479
        %v482 = vunpack.c.l.s4 1934713408
        %v483 = vunpack.c.0.s8 %v482
        %v484 = vlaneseq
        %v485 = vshrl.u32 %v484, 7
        %v486 = vsub.s32 %v483, %v485
        %v487 = vrot.slane %v473, %v486
        %v488 = vcombine.low %v464, %v480
        %v489 = vcombine.high %v464, %v480
        %v490 = vcombine.low %v471, %v487
        %v491 = vcombine.high %v471, %v487
        %vm492 = vcmask 64512
        %493 = vst.msk [vmem:[%s252] sm:$0xff] %vm492, %v488
        %494 = vst.msk [vmem:[%s252 + $0x8] sm:$0xff] %vm492, %v489
        %495 = vst.msk [vmem:[%s252 + $0x10] sm:$0xff] %vm492, %v490
        %496 = vst.msk [vmem:[%s252 + $0x18] sm:$0xff] %vm492, %v491
        %497 = vrot.lane.b32.xlu0 %v343, 96
        %v498 = vpop.permute.xlu0 %497
        %499 = vrot.lane.b32.xlu0 %v348, 96
        %v500 = vpop.permute.xlu0 %499
        %501 = vrot.lane.b32.xlu0 %v351, 96
        %v502 = vpop.permute.xlu0 %501
        %503 = vrot.lane.b32.xlu0 %v354, 96
        %v504 = vpop.permute.xlu0 %503
        %v509 = vcombine.low %v498, %v502
        %v510 = vcombine.high %v498, %v502
        %v512 = vunpack.c.l.s4 1983009808
        %v513 = vunpack.c.0.s8 %v512
        %v514 = vlaneseq
        %v515 = vshrl.u32 %v514, 7
        %v516 = vsub.s32 %v513, %v515
        %v517 = vrot.slane %v509, %v516
        %v519 = vunpack.c.l.s4 1983009808
        %v520 = vunpack.c.0.s8 %v519
        %v521 = vlaneseq
        %v522 = vshrl.u32 %v521, 7
        %v523 = vsub.s32 %v520, %v522
        %v524 = vrot.slane %v510, %v523
        %v525 = vcombine.low %v500, %v504
        %v526 = vcombine.high %v500, %v504
        %v528 = vunpack.c.l.s4 1983009808
        %v529 = vunpack.c.0.s8 %v528
        %v530 = vlaneseq
        %v531 = vshrl.u32 %v530, 7
        %v532 = vsub.s32 %v529, %v531
        %v533 = vrot.slane %v525, %v532
        %v535 = vunpack.c.l.s4 1983009808
        %v536 = vunpack.c.0.s8 %v535
        %v537 = vlaneseq
        %v538 = vshrl.u32 %v537, 7
        %v539 = vsub.s32 %v536, %v538
        %v540 = vrot.slane %v526, %v539
        %v541 = vcombine.low %v517, %v533
        %v542 = vcombine.high %v517, %v533
        %v544 = vunpack.c.l.s4 1934713408
        %v545 = vunpack.c.0.s8 %v544
        %v546 = vlaneseq
        %v547 = vshrl.u32 %v546, 7
        %v548 = vsub.s32 %v545, %v547
        %v549 = vrot.slane %v541, %v548
        %v551 = vunpack.c.l.s4 1934713408
        %v552 = vunpack.c.0.s8 %v551
        %v553 = vlaneseq
        %v554 = vshrl.u32 %v553, 7
        %v555 = vsub.s32 %v552, %v554
        %v556 = vrot.slane %v542, %v555
        %v557 = vcombine.low %v524, %v540
        %v558 = vcombine.high %v524, %v540
        %v560 = vunpack.c.l.s4 1934713408
        %v561 = vunpack.c.0.s8 %v560
        %v562 = vlaneseq
        %v563 = vshrl.u32 %v562, 7
        %v564 = vsub.s32 %v561, %v563
        %v565 = vrot.slane %v557, %v564
        %v567 = vunpack.c.l.s4 1934713408
        %v568 = vunpack.c.0.s8 %v567
        %v569 = vlaneseq
        %v570 = vshrl.u32 %v569, 7
        %v571 = vsub.s32 %v568, %v570
        %v572 = vrot.slane %v558, %v571
        %v573 = vcombine.high %v549, 0.0
        %v574 = vcombine.high %v556, 0.0
        %v575 = vcombine.high %v565, 0.0
        %v576 = vcombine.high %v572, 0.0
        %v577 = vcombine.low %v549, %v556
        %v579 = vunpack.c.l.s4 1983009808
        %v580 = vunpack.c.0.s8 %v579
        %v581 = vlaneseq
        %v582 = vshrl.u32 %v581, 7
        %v583 = vsub.s32 %v580, %v582
        %v584 = vrot.slane %v577, %v583
        %v585 = vcombine.low %v573, %v574
        %v587 = vunpack.c.l.s4 1983009808
        %v588 = vunpack.c.0.s8 %v587
        %v589 = vlaneseq
        %v590 = vshrl.u32 %v589, 7
        %v591 = vsub.s32 %v588, %v590
        %v592 = vrot.slane %v585, %v591
        %v593 = vcombine.low %v565, %v572
        %v595 = vunpack.c.l.s4 1983009808
        %v596 = vunpack.c.0.s8 %v595
        %v597 = vlaneseq
        %v598 = vshrl.u32 %v597, 7
        %v599 = vsub.s32 %v596, %v598
        %v600 = vrot.slane %v593, %v599
        %v601 = vcombine.low %v575, %v576
        %v603 = vunpack.c.l.s4 1983009808
        %v604 = vunpack.c.0.s8 %v603
        %v605 = vlaneseq
        %v606 = vshrl.u32 %v605, 7
        %v607 = vsub.s32 %v604, %v606
        %v608 = vrot.slane %v601, %v607
        %v609 = vcombine.low %v584, %v592
        %v610 = vcombine.high %v584, %v592
        %v612 = vunpack.c.l.s4 1934713408
        %v613 = vunpack.c.0.s8 %v612
        %v614 = vlaneseq
        %v615 = vshrl.u32 %v614, 7
        %v616 = vsub.s32 %v613, %v615
        %v617 = vrot.slane %v609, %v616
        %v619 = vunpack.c.l.s4 1934713408
        %v620 = vunpack.c.0.s8 %v619
        %v621 = vlaneseq
        %v622 = vshrl.u32 %v621, 7
        %v623 = vsub.s32 %v620, %v622
        %v624 = vrot.slane %v610, %v623
        %v625 = vcombine.low %v600, %v608
        %v626 = vcombine.high %v600, %v608
        %v628 = vunpack.c.l.s4 1934713408
        %v629 = vunpack.c.0.s8 %v628
        %v630 = vlaneseq
        %v631 = vshrl.u32 %v630, 7
        %v632 = vsub.s32 %v629, %v631
        %v633 = vrot.slane %v625, %v632
        %v635 = vunpack.c.l.s4 1934713408
        %v636 = vunpack.c.0.s8 %v635
        %v637 = vlaneseq
        %v638 = vshrl.u32 %v637, 7
        %v639 = vsub.s32 %v636, %v638
        %v640 = vrot.slane %v626, %v639
        %v641 = vcombine.low %v617, %v633
        %v642 = vcombine.high %v617, %v633
        %v643 = vcombine.low %v624, %v640
        %v644 = vcombine.high %v624, %v640
        %645 = vst.msk [vmem:[%s259] sm:$0xff] %vm492, %v641
        %646 = vst.msk [vmem:[%s259 + $0x8] sm:$0xff] %vm492, %v642
        %647 = vst.msk [vmem:[%s259 + $0x10] sm:$0xff] %vm492, %v643
        %648 = vst.msk [vmem:[%s259 + $0x18] sm:$0xff] %vm492, %v644
        %649 = vrot.lane.b32.xlu0 %v343, 64
        %v650 = vpop.permute.xlu0 %649
        %651 = vrot.lane.b32.xlu0 %v348, 64
        %v652 = vpop.permute.xlu0 %651
        %653 = vrot.lane.b32.xlu0 %v351, 64
        %v654 = vpop.permute.xlu0 %653
        %655 = vrot.lane.b32.xlu0 %v354, 64
        %v656 = vpop.permute.xlu0 %655
        %v661 = vcombine.low %v650, %v654
        %v662 = vcombine.high %v650, %v654
        %v664 = vunpack.c.l.s4 1983009808
        %v665 = vunpack.c.0.s8 %v664
        %v666 = vlaneseq
        %v667 = vshrl.u32 %v666, 7
        %v668 = vsub.s32 %v665, %v667
        %v669 = vrot.slane %v661, %v668
        %v671 = vunpack.c.l.s4 1983009808
        %v672 = vunpack.c.0.s8 %v671
        %v673 = vlaneseq
        %v674 = vshrl.u32 %v673, 7
        %v675 = vsub.s32 %v672, %v674
        %v676 = vrot.slane %v662, %v675
        %v677 = vcombine.low %v652, %v656
        %v678 = vcombine.high %v652, %v656
        %v680 = vunpack.c.l.s4 1983009808
        %v681 = vunpack.c.0.s8 %v680
        %v682 = vlaneseq
        %v683 = vshrl.u32 %v682, 7
        %v684 = vsub.s32 %v681, %v683
        %v685 = vrot.slane %v677, %v684
        %v687 = vunpack.c.l.s4 1983009808
        %v688 = vunpack.c.0.s8 %v687
        %v689 = vlaneseq
        %v690 = vshrl.u32 %v689, 7
        %v691 = vsub.s32 %v688, %v690
        %v692 = vrot.slane %v678, %v691
        %v693 = vcombine.low %v669, %v685
        %v694 = vcombine.high %v669, %v685
        %v696 = vunpack.c.l.s4 1934713408
        %v697 = vunpack.c.0.s8 %v696
        %v698 = vlaneseq
        %v699 = vshrl.u32 %v698, 7
        %v700 = vsub.s32 %v697, %v699
        %v701 = vrot.slane %v693, %v700
        %v703 = vunpack.c.l.s4 1934713408
        %v704 = vunpack.c.0.s8 %v703
        %v705 = vlaneseq
        %v706 = vshrl.u32 %v705, 7
        %v707 = vsub.s32 %v704, %v706
        %v708 = vrot.slane %v694, %v707
        %v709 = vcombine.low %v676, %v692
        %v710 = vcombine.high %v676, %v692
        %v712 = vunpack.c.l.s4 1934713408
        %v713 = vunpack.c.0.s8 %v712
        %v714 = vlaneseq
        %v715 = vshrl.u32 %v714, 7
        %v716 = vsub.s32 %v713, %v715
        %v717 = vrot.slane %v709, %v716
        %v719 = vunpack.c.l.s4 1934713408
        %v720 = vunpack.c.0.s8 %v719
        %v721 = vlaneseq
        %v722 = vshrl.u32 %v721, 7
        %v723 = vsub.s32 %v720, %v722
        %v724 = vrot.slane %v710, %v723
        %v725 = vcombine.high %v701, 0.0
        %v726 = vcombine.high %v708, 0.0
        %v727 = vcombine.high %v717, 0.0
        %v728 = vcombine.high %v724, 0.0
        %v729 = vcombine.low %v701, %v708
        %v731 = vunpack.c.l.s4 1983009808
        %v732 = vunpack.c.0.s8 %v731
        %v733 = vlaneseq
        %v734 = vshrl.u32 %v733, 7
        %v735 = vsub.s32 %v732, %v734
        %v736 = vrot.slane %v729, %v735
        %v737 = vcombine.low %v725, %v726
        %v739 = vunpack.c.l.s4 1983009808
        %v740 = vunpack.c.0.s8 %v739
        %v741 = vlaneseq
        %v742 = vshrl.u32 %v741, 7
        %v743 = vsub.s32 %v740, %v742
        %v744 = vrot.slane %v737, %v743
        %v745 = vcombine.low %v717, %v724
        %v747 = vunpack.c.l.s4 1983009808
        %v748 = vunpack.c.0.s8 %v747
        %v749 = vlaneseq
        %v750 = vshrl.u32 %v749, 7
        %v751 = vsub.s32 %v748, %v750
        %v752 = vrot.slane %v745, %v751
        %v753 = vcombine.low %v727, %v728
        %v755 = vunpack.c.l.s4 1983009808
        %v756 = vunpack.c.0.s8 %v755
        %v757 = vlaneseq
        %v758 = vshrl.u32 %v757, 7
        %v759 = vsub.s32 %v756, %v758
        %v760 = vrot.slane %v753, %v759
        %v761 = vcombine.low %v736, %v744
        %v762 = vcombine.high %v736, %v744
        %v764 = vunpack.c.l.s4 1934713408
        %v765 = vunpack.c.0.s8 %v764
        %v766 = vlaneseq
        %v767 = vshrl.u32 %v766, 7
        %v768 = vsub.s32 %v765, %v767
        %v769 = vrot.slane %v761, %v768
        %v771 = vunpack.c.l.s4 1934713408
        %v772 = vunpack.c.0.s8 %v771
        %v773 = vlaneseq
        %v774 = vshrl.u32 %v773, 7
        %v775 = vsub.s32 %v772, %v774
        %v776 = vrot.slane %v762, %v775
        %v777 = vcombine.low %v752, %v760
        %v778 = vcombine.high %v752, %v760
        %v780 = vunpack.c.l.s4 1934713408
        %v781 = vunpack.c.0.s8 %v780
        %v782 = vlaneseq
        %v783 = vshrl.u32 %v782, 7
        %v784 = vsub.s32 %v781, %v783
        %v785 = vrot.slane %v777, %v784
        %v787 = vunpack.c.l.s4 1934713408
        %v788 = vunpack.c.0.s8 %v787
        %v789 = vlaneseq
        %v790 = vshrl.u32 %v789, 7
        %v791 = vsub.s32 %v788, %v790
        %v792 = vrot.slane %v778, %v791
        %v793 = vcombine.low %v769, %v785
        %v794 = vcombine.high %v769, %v785
        %v795 = vcombine.low %v776, %v792
        %v796 = vcombine.high %v776, %v792
        %797 = vst.msk [vmem:[%s266] sm:$0xff] %vm492, %v793
        %798 = vst.msk [vmem:[%s266 + $0x8] sm:$0xff] %vm492, %v794
        %799 = vst.msk [vmem:[%s266 + $0x10] sm:$0xff] %vm492, %v795
        %800 = vst.msk [vmem:[%s266 + $0x18] sm:$0xff] %vm492, %v796
        %s801 = sand.u32 %s97, 1
        %s802 = scalar_lea.sflag [#allocation4], %s801
        %s803 = sand.u32 %s97, 1
        %s804 = smul.addr %s803, 32
        %s805 = scalar_lea.vmem [#allocation7], %s804
        %s806 = sand.u32 %s26, 1
        %s807 = scalar_lea.sflag [#allocation9], %s806
        %s808 = sand.u32 %s125, 1
        %s809 = smul.addr %s808, 32
        %s810 = scalar_lea.vmem [#allocation8], %s809
        %s811 = sand.u32 %s26, 1
        %s812 = scalar_lea.sflag [#allocation9], %s811
        %s813 = sand.u32 %s153, 1
        %s814 = smul.addr %s813, 32
        %s815 = scalar_lea.vmem [#allocation10], %s814
        // Predicated region
        $region37: #{tpu_custom_call.1} parent=27 // pred_check
          %p816 = pneg %p107
        $region38: #{tpu_custom_call.1} parent=27 // pred_check_branch
          %818 = sbr.rel (%p816) target = $region40
        $region39: #{tpu_custom_call.1} parent=27 // pred_region
          %s820 = ssub.s32 512, 512
          %821 = vsyncadd %s802, %s820
          %s822 = smul.addr %s30, 4
          %s823 = sadd.s32 %s31, %s822
          %s824 = smul.addr %s823, 128
          %s825 = scalar_lea.hbm %s2, %s824
          %s826 = sshll.u32 %s805, 4
          %s827 = int_to_ptr.vmem [resolvable:$true] %s826
          %832 = dma.vmem_to_hbm [thread:$0]  %s827, 512, %s825, %s802, 128, 128, 8
        $region40: #{tpu_custom_call.1} parent=27 // pred_fallthru
          _
        // Predicated region
        $region41: #{tpu_custom_call.1} parent=27 // pred_check
          %p833 = pneg %p135
        $region42: #{tpu_custom_call.1} parent=27 // pred_check_branch
          %835 = sbr.rel (%p833) target = $region44
        $region43: #{tpu_custom_call.1} parent=27 // pred_region
          %s837 = ssub.s32 512, 512
          %838 = vsyncadd %s807, %s837
          %s839 = smul.addr %s30, 4
          %s840 = sadd.s32 %s31, %s839
          %s841 = smul.addr %s840, 128
          %s842 = scalar_lea.hbm %s3, %s841
          %s843 = sshll.u32 %s810, 4
          %s844 = int_to_ptr.vmem [resolvable:$true] %s843
          %849 = dma.vmem_to_hbm [thread:$0]  %s844, 512, %s842, %s807, 128, 128, 8
        $region44: #{tpu_custom_call.1} parent=27 // pred_fallthru
          _
        // Predicated region
        $region45: #{tpu_custom_call.1} parent=27 // pred_check
          %p850 = pneg %p163
        $region46: #{tpu_custom_call.1} parent=27 // pred_check_branch
          %852 = sbr.rel (%p850) target = $region48
        $region47: #{tpu_custom_call.1} parent=27 // pred_region
          %s854 = ssub.s32 512, 512
          %855 = vsyncadd %s812, %s854
          %s856 = smul.addr %s30, 4
          %s857 = sadd.s32 %s31, %s856
          %s858 = smul.addr %s857, 128
          %s859 = scalar_lea.hbm %s4, %s858
          %s860 = sshll.u32 %s815, 4
          %s861 = int_to_ptr.vmem [resolvable:$true] %s860
          %866 = dma.vmem_to_hbm [thread:$0]  %s861, 512, %s859, %s812, 128, 128, 8
        $region48: #{tpu_custom_call.1} parent=27 // pred_fallthru
          _
      $region28: #{tpu_custom_call.1} parent=5 // pred_fallthru
        _
      %p867 = scmp.le.s32.totalorder 2, %s21
      // Predicated region
      $region49: #{tpu_custom_call.1} parent=5 // pred_check
        %p868 = pneg %p867
      $region50: #{tpu_custom_call.1} parent=5 // pred_check_branch
        %870 = sbr.rel (%p868) target = $region52
      $region51: #{tpu_custom_call.1} parent=5 // pred_region
        %s871 = ssub.s32 %s21, 2
        // Predicated region
        $region53: #{tpu_custom_call.1} parent=51 // pred_check
          %p872 = pneg %p113
        $region54: #{tpu_custom_call.1} parent=51 // pred_check_branch
          %874 = sbr.rel (%p872) target = $region56
        $region55: #{tpu_custom_call.1} parent=51 // pred_region
          %s875 = sand.u32 %s98, 1
          %s876 = scalar_lea.sflag [#allocation4], %s875
          %s877 = sand.u32 %s98, 1
          %s878 = smul.addr %s877, 32
          %s879 = scalar_lea.vmem [#allocation7], %s878
          %880 = dma.done %s876, 512
        $region56: #{tpu_custom_call.1} parent=51 // pred_fallthru
          _
        // Predicated region
        $region57: #{tpu_custom_call.1} parent=51 // pred_check
          %p881 = pneg %p141
        $region58: #{tpu_custom_call.1} parent=51 // pred_check_branch
          %883 = sbr.rel (%p881) target = $region60
        $region59: #{tpu_custom_call.1} parent=51 // pred_region
          %s884 = sand.u32 %s27, 1
          %s885 = scalar_lea.sflag [#allocation9], %s884
          %s886 = sand.u32 %s126, 1
          %s887 = smul.addr %s886, 32
          %s888 = scalar_lea.vmem [#allocation8], %s887
          %889 = dma.done %s885, 512
        $region60: #{tpu_custom_call.1} parent=51 // pred_fallthru
          _
        // Predicated region
        $region61: #{tpu_custom_call.1} parent=51 // pred_check
          %p890 = pneg %p169
        $region62: #{tpu_custom_call.1} parent=51 // pred_check_branch
          %892 = sbr.rel (%p890) target = $region64
        $region63: #{tpu_custom_call.1} parent=51 // pred_region
          %s893 = sand.u32 %s27, 1
          %s894 = scalar_lea.sflag [#allocation9], %s893
          %s895 = sand.u32 %s154, 1
          %s896 = smul.addr %s895, 32
          %s897 = scalar_lea.vmem [#allocation10], %s896
          %898 = dma.done %s894, 512
        $region64: #{tpu_custom_call.1} parent=51 // pred_fallthru
          _
      $region52: #{tpu_custom_call.1} parent=5 // pred_fallthru
        _
    $region6: #{tpu_custom_call.1} parent=1 // loop_footer
      %s25 = sadd.s32 1, %s21
    $region7: #{tpu_custom_call.1} parent=1 // loop_footer_branch
      %20 = sbr.rel target = $region3
    $region8: #{tpu_custom_call.1} parent=1 // loop_exit
      _
    %899 = vsyncpa [#allocation3], 1
    %s900 = scalar_lea.sflag [#allocation3], 1
    %901 = vsyncpa %s900, 1
    %902 = vsyncpa [#allocation6], 1
    %903 = vsyncpa [#allocation4], 1
    %s904 = scalar_lea.sflag [#allocation4], 1
    %905 = vsyncpa %s904, 1
    %906 = vsyncpa [#allocation9], 1
    %s907 = scalar_lea.sflag [#allocation9], 1
    %908 = vsyncpa %s907, 1

</llo_original>
